<compile_context>
chip_gen: v7x
topology: tpu7x:2x2x1
jax: 0.10.0
libtpu: 0.0.40
codegen_flags: <defaults>
</compile_context>

<pallas_src>
import functools

import jax
import jax.numpy as jnp
from jax.experimental import pallas as pl
from jax.experimental.pallas import tpu as pltpu


def _round_up(x: int, m: int) -> int:
    return (x + m - 1) // m * m


def _chip_vmem_bytes() -> int:
    """Per-TensorCore VMEM capacity; conservative 64 MiB fallback (v7x)."""
    try:
        info = pltpu.get_tpu_info()
        v = getattr(info, "vmem_capacity_bytes", None)
        if v:
            return int(v)
    except Exception:
        pass
    return 64 * 1024 * 1024


def _largest_divisor_tile(n: int) -> int:
    """Largest hidden-dim tile <= 512 that divides n (n is a multiple of 128)."""
    for c in (512, 384, 256, 128):
        if n % c == 0:
            return c
    return 128


def _layer_norm(x, gamma_ref, beta_ref, eps: float, d_model: int):
    """LayerNorm over the (possibly zero-padded) feature dim, using true d_model."""
    dp = x.shape[-1]
    inv_d = jnp.float32(1.0 / d_model)
    if dp != d_model:
        # Padded input columns are zero; mask them out of the statistics so the
        # result matches the unpadded module exactly.  Padded gamma/beta are zero,
        # so padded output columns stay exactly zero.
        col = jax.lax.broadcasted_iota(jnp.int32, (1, dp), 1)
        valid = (col < d_model).astype(jnp.float32)
        mean = jnp.sum(x * valid, axis=-1, keepdims=True) * inv_d
        centered = (x - mean) * valid
    else:
        mean = jnp.sum(x, axis=-1, keepdims=True) * inv_d
        centered = x - mean
    var = jnp.sum(centered * centered, axis=-1, keepdims=True) * inv_d
    xn = centered * jax.lax.rsqrt(var + jnp.float32(eps))
    return xn * gamma_ref[...].astype(jnp.float32) + beta_ref[...].astype(jnp.float32)


def _gelu(h, tanh_gelu: bool):
    if tanh_gelu:
        # torch.nn.GELU(approximate='tanh'): tanh runs on the EUP (separate VLIW slot).
        c = jnp.float32(0.7978845608028654)  # sqrt(2/pi)
        return 0.5 * h * (1.0 + jnp.tanh(c * (h + jnp.float32(0.044715) * h * h * h)))
    # Exact erf form — matches torch.nn.GELU(approximate='none').
    return 0.5 * h * (1.0 + jax.lax.erf(h * jnp.float32(0.7071067811865476)))


def _ffn_kernel_resident(x_ref, gamma_ref, beta_ref, w1_ref, b1_ref, w2_ref, b2_ref,
                         o_ref, *, eps, use_layer_norm, d_model, chunk, tanh_gelu):
    """Whole weights resident in VMEM; hidden dim chunked inside the kernel."""
    x = x_ref[...].astype(jnp.float32)
    xn = _layer_norm(x, gamma_ref, beta_ref, eps, d_model) if use_layer_norm else x
    xn_b = xn.astype(w1_ref.dtype)           # bf16 LHS for the MXU

    h_pad = w1_ref.shape[1]
    n_chunks = h_pad // chunk
    y = jnp.zeros((x.shape[0], w2_ref.shape[1]), jnp.float32)
    # Fully-unrolled chunk loop (static slices are zero-cost ref views).  Breaking the
    # matmul1 -> GELU -> matmul2 chain per chunk lets the scheduler overlap chunk c's
    # GELU (VPU/EUP) with chunk c+1's matmuls (MXU) and keeps the live hidden
    # intermediate at tm*chunk instead of tm*h_pad.
    for ci in range(n_chunks):
        lo = ci * chunk
        h = jnp.dot(xn_b, w1_ref[:, lo:lo + chunk], preferred_element_type=jnp.float32)
        h = _gelu(h + b1_ref[:, lo:lo + chunk].astype(jnp.float32), tanh_gelu)
        y = y + jnp.dot(h.astype(w2_ref.dtype), w2_ref[lo:lo + chunk, :],
                        preferred_element_type=jnp.float32)

    # Dropout(p) is identity in eval mode.
    # TODO(synk): training-mode dropout (pltpu.prng_* masking) not implemented.
    o_ref[...] = (y + b2_ref[...].astype(jnp.float32)).astype(o_ref.dtype)


def _ffn_kernel_streamed(x_ref, gamma_ref, beta_ref, w1_ref, b1_ref, w2_ref, b2_ref,
                         o_ref, xn_ref, acc_ref, *, eps, use_layer_norm, d_model,
                         tanh_gelu):
    """Weights streamed over a second ('arbitrary') grid axis of hidden-dim chunks."""
    c = pl.program_id(1)

    @pl.when(c == 0)
    def _():
        x = x_ref[...].astype(jnp.float32)
        xn = _layer_norm(x, gamma_ref, beta_ref, eps, d_model) if use_layer_norm else x
        xn_ref[...] = xn.astype(xn_ref.dtype)        # cache LayerNorm across chunks
        acc_ref[...] = jnp.zeros_like(acc_ref)

    h = jnp.dot(xn_ref[...], w1_ref[...], preferred_element_type=jnp.float32)
    h = _gelu(h + b1_ref[...].astype(jnp.float32), tanh_gelu)
    acc_ref[...] += jnp.dot(h.astype(w2_ref.dtype), w2_ref[...],
                            preferred_element_type=jnp.float32)

    @pl.when(c == pl.num_programs(1) - 1)
    def _():
        # Dropout(p) is identity in eval mode.
        o_ref[...] = (acc_ref[...] + b2_ref[...].astype(jnp.float32)).astype(o_ref.dtype)


def feed_forward(x, params, *, layer_norm: bool = True, eps: float = 1e-5,
                 row_tile=None, approximate_gelu: bool = False, stream_weights=None):
    """x: (batch, seq, d_model) float32.  params: dict of weights (see init_params).

    stream_weights=None auto-selects the streamed-weight path when bf16 w1+w2 exceed
    ~40% of the chip's per-core VMEM; approximate_gelu=True uses the tanh GELU.
    """
    batch, seq, d_model = x.shape
    hidden_dim = params["w1"].shape[1]

    # Lane-dense feature dims (multiples of 128).
    d_pad = _round_up(d_model, 128)
    h_pad = _round_up(hidden_dim, 128)
    n_rows = batch * seq

    chip_vmem = _chip_vmem_bytes()

    weight_bytes = 2 * 2 * d_pad * h_pad                 # w1 + w2 as bf16
    if stream_weights is None:
        stream_weights = weight_bytes > 0.4 * chip_vmem

    tile = _largest_divisor_tile(h_pad)                  # hidden chunk / weight slice

    # Chip-aware row tile: bigger tiles amortize per-step overhead on 128-MiB parts.
    if row_tile is None:
        row_tile = 512 if chip_vmem >= 100 * (1 << 20) else 256
    tm = _round_up(min(row_tile, _round_up(n_rows, 8)), 8)

    def est(tm_: int) -> int:
        if stream_weights:
            return (4 * tm_ * d_pad * 4                       # x + out (double-buffered f32)
                    + 2 * (d_pad * tile + tile * d_pad) * 2   # w1/w2 slices (double-buffered bf16)
                    + 2 * tile * 4 + 3 * d_pad * 4            # b1 (dbl) + gamma/beta/b2
                    + tm_ * d_pad * (2 + 4)                   # xn bf16 + acc f32 scratch
                    + tm_ * tile * 6)                         # hidden chunk f32 + bf16
        return (4 * tm_ * d_pad * 4                           # x + out (double-buffered f32)
                + 2 * d_pad * h_pad * 2                       # w1 + w2 resident bf16
                + (3 * d_pad + h_pad) * 4                     # gamma/beta/b1/b2
                + tm_ * d_pad * (4 + 2 + 4)                   # xn f32 + xn bf16 + y acc f32
                + tm_ * tile * 6)                             # hidden chunk f32 + bf16

    # Shrink the row tile if the footprint would overflow this chip's VMEM.
    while tm > 8 and est(tm) > int(0.8 * chip_vmem):
        tm = _round_up(max(tm // 2, 8), 8)
    # Guarantee >= 2 row-grid steps so both v7x TensorCores get work ("parallel" axis).
    while _round_up(n_rows, tm) // tm < 2 and tm > 8:
        tm = _round_up(max(tm // 2, 8), 8)
    n_padded = _round_up(n_rows, tm)

    x2d = x.reshape(n_rows, d_model)
    row_pad, col_pad = n_padded - n_rows, d_pad - d_model
    if row_pad or col_pad:                                # pad only the ragged tail
        x2d = jnp.pad(x2d, ((0, row_pad), (0, col_pad)))
    # TODO(synk): on v5e with small hidden_dim the kernel is HBM-bound on x/out;
    # streaming x as bf16 with pl.Buffered(3) would halve that traffic.

    def pad_vec(v, n):
        v = v.reshape(1, -1).astype(jnp.float32)
        return v if v.shape[1] == n else jnp.pad(v, ((0, 0), (0, n - v.shape[1])))

    def pad_mat(w, r, c):
        pr, pc = r - w.shape[0], c - w.shape[1]
        return w if (pr == 0 and pc == 0) else jnp.pad(w, ((0, pr), (0, pc)))

    gamma = pad_vec(params["gamma"], d_pad)
    beta = pad_vec(params["beta"], d_pad)
    b1 = pad_vec(params["b1"], h_pad)
    b2 = pad_vec(params["b2"], d_pad)
    # bf16 weight streaming: MXU-native, half the HBM/VMEM traffic; f32 accumulation.
    w1 = pad_mat(params["w1"], d_pad, h_pad).astype(jnp.bfloat16)
    w2 = pad_mat(params["w2"], h_pad, d_pad).astype(jnp.bfloat16)

    vmem_limit = int(min(max(2 * est(tm), 32 * (1 << 20)), int(0.85 * chip_vmem)))
    inv = lambda *_: (0, 0)                               # grid-invariant operands
    common = dict(eps=eps, use_layer_norm=layer_norm, d_model=d_model,
                  tanh_gelu=approximate_gelu)

    if stream_weights:
        kernel = functools.partial(_ffn_kernel_streamed, **common)
        grid = (n_padded // tm, h_pad // tile)
        out = pl.pallas_call(
            kernel,
            out_shape=jax.ShapeDtypeStruct((n_padded, d_pad), x.dtype),
            grid_spec=pltpu.PrefetchScalarGridSpec(
                num_scalar_prefetch=0,
                grid=grid,
                in_specs=[
                    pl.BlockSpec((tm, d_pad), lambda i, c: (i, 0)),              # x rows
                    pl.BlockSpec((1, d_pad), inv, pipeline_mode=pl.Buffered(1)),  # gamma
                    pl.BlockSpec((1, d_pad), inv, pipeline_mode=pl.Buffered(1)),  # beta
                    pl.BlockSpec((d_pad, tile), lambda i, c: (0, c)),            # w1 slice
                    pl.BlockSpec((1, tile), lambda i, c: (0, c)),                # b1 slice
                    pl.BlockSpec((tile, d_pad), lambda i, c: (c, 0)),            # w2 slice
                    pl.BlockSpec((1, d_pad), inv, pipeline_mode=pl.Buffered(1)),  # b2
                ],
                out_specs=pl.BlockSpec((tm, d_pad), lambda i, c: (i, 0)),
                scratch_shapes=[pltpu.VMEM((tm, d_pad), jnp.bfloat16),   # cached LN(x)
                                pltpu.VMEM((tm, d_pad), jnp.float32)]),  # f32 accumulator
            compiler_params=pltpu.CompilerParams(
                dimension_semantics=("parallel", "arbitrary"),
                vmem_limit_bytes=vmem_limit),
        )(x2d, gamma, beta, w1, b1, w2, b2)
    else:
        kernel = functools.partial(_ffn_kernel_resident, chunk=tile, **common)
        grid = (n_padded // tm,)
        out = pl.pallas_call(
            kernel,
            out_shape=jax.ShapeDtypeStruct((n_padded, d_pad), x.dtype),
            grid_spec=pltpu.PrefetchScalarGridSpec(
                num_scalar_prefetch=0,
                grid=grid,
                in_specs=[
                    pl.BlockSpec((tm, d_pad), lambda i: (i, 0)),                   # x rows
                    pl.BlockSpec((1, d_pad), inv, pipeline_mode=pl.Buffered(1)),    # gamma
                    pl.BlockSpec((1, d_pad), inv, pipeline_mode=pl.Buffered(1)),    # beta
                    pl.BlockSpec((d_pad, h_pad), inv, pipeline_mode=pl.Buffered(1)),  # w1
                    pl.BlockSpec((1, h_pad), inv, pipeline_mode=pl.Buffered(1)),    # b1
                    pl.BlockSpec((h_pad, d_pad), inv, pipeline_mode=pl.Buffered(1)),  # w2
                    pl.BlockSpec((1, d_pad), inv, pipeline_mode=pl.Buffered(1)),    # b2
                ],
                out_specs=pl.BlockSpec((tm, d_pad), lambda i: (i, 0))),
            compiler_params=pltpu.CompilerParams(
                dimension_semantics=("parallel",),
                vmem_limit_bytes=vmem_limit),
        )(x2d, gamma, beta, w1, b1, w2, b2)

    return out[:n_rows, :d_model].reshape(batch, seq, d_model)


def init_params(key, d_model: int, hidden_dim: int):
    """Deterministic synthetic params with the same shapes as the torch module."""
    k1, k2, k3, k4 = jax.random.split(key, 4)
    lim1 = 1.0 / jnp.sqrt(d_model)
    lim2 = 1.0 / jnp.sqrt(hidden_dim)
    return {
        "gamma": jnp.ones((d_model,), jnp.float32),
        "beta": jnp.zeros((d_model,), jnp.float32),
        # Stored already transposed for x @ w (torch Linear weight is (out, in)).
        "w1": jax.random.uniform(k1, (d_model, hidden_dim), jnp.float32, -lim1, lim1),
        "b1": jax.random.uniform(k2, (hidden_dim,), jnp.float32, -lim1, lim1),
        "w2": jax.random.uniform(k3, (hidden_dim, d_model), jnp.float32, -lim2, lim2),
        "b2": jax.random.uniform(k4, (d_model,), jnp.float32, -lim2, lim2),
    }


def _reference(x, params, *, layer_norm: bool = True, eps: float = 1e-5,
               mxu_dtype=None):
    """Pure-JAX reference of the torch forward (eval mode).

    mxu_dtype=jnp.bfloat16 reproduces the kernel's bf16 matmul operands (with f32
    accumulation); mxu_dtype=None is the full-f32 torch-equivalent reference.
    """
    xf = x.astype(jnp.float32)
    if layer_norm:
        mean = jnp.mean(xf, axis=-1, keepdims=True)
        var = jnp.mean((xf - mean) ** 2, axis=-1, keepdims=True)
        xf = (xf - mean) * jax.lax.rsqrt(var + eps) * params["gamma"] + params["beta"]
    w1, w2 = params["w1"], params["w2"]
    a = xf
    if mxu_dtype is not None:
        a, w1 = a.astype(mxu_dtype), w1.astype(mxu_dtype)
    h = jnp.dot(a, w1, preferred_element_type=jnp.float32) + params["b1"]
    h = 0.5 * h * (1.0 + jax.lax.erf(h / jnp.sqrt(2.0)))
    hq = h
    if mxu_dtype is not None:
        hq, w2 = hq.astype(mxu_dtype), w2.astype(mxu_dtype)
    y = jnp.dot(hq, w2, preferred_element_type=jnp.float32) + params["b2"]
    return y.astype(x.dtype)


if __name__ == "__main__":
    key = jax.random.PRNGKey(0)
    kx, kp, kx2, kp2 = jax.random.split(key, 4)

    # --- small shape: resident-weight path with in-kernel hidden chunking ----------
    batch, seq, d_model, hidden_dim = 2, 8, 32, 64
    x = jax.random.normal(kx, (batch, seq, d_model), jnp.float32)
    params = init_params(kp, d_model, hidden_dim)

    out = jax.block_until_ready(feed_forward(x, params, layer_norm=True))
    assert out.shape == (batch, seq, d_model)

    # Matched reference (same bf16 matmul operands, f32 accumulation) — tight check.
    ref_matched = _reference(x, params, layer_norm=True, mxu_dtype=jnp.bfloat16)
    err = float(jnp.max(jnp.abs(out - ref_matched)))
    assert jnp.allclose(out, ref_matched, atol=1e-3, rtol=1e-3), f"resident max err {err}"

    # Sanity vs full-f32 torch-equivalent reference (bf16 weight quantization noise).
    ref_f32 = _reference(x, params, layer_norm=True)
    assert jnp.allclose(out, ref_f32, atol=5e-2, rtol=5e-2), \
        f"max abs err vs f32 ref {float(jnp.max(jnp.abs(out - ref_f32)))}"

    # Optional tanh-GELU path stays close to the erf reference.
    out_tanh = jax.block_until_ready(
        feed_forward(x, params, layer_norm=True, approximate_gelu=True))
    assert out_tanh.shape == (batch, seq, d_model)
    assert jnp.allclose(out_tanh, ref_f32, atol=5e-2, rtol=5e-2)

    # --- streamed-weight path (forced; auto-selected when weights are large) -------
    batch2, seq2, dm2, hd2 = 2, 96, 64, 1024
    x2 = jax.random.normal(kx2, (batch2, seq2, dm2), jnp.float32)
    params2 = init_params(kp2, dm2, hd2)
    out2 = jax.block_until_ready(
        feed_forward(x2, params2, layer_norm=True, stream_weights=True))
    assert out2.shape == (batch2, seq2, dm2)
    ref2 = _reference(x2, params2, layer_norm=True, mxu_dtype=jnp.bfloat16)
    err2 = float(jnp.max(jnp.abs(out2 - ref2)))
    assert jnp.allclose(out2, ref2, atol=2e-3, rtol=2e-3), f"streamed max err {err2}"

    print("KERNEL_OK")
</pallas_src>

<mosaic_0001>
module attributes {stable_mosaic.version = 11 : i64} {
  func.func @_ffn_kernel_resident(%arg0: i32, %arg1: memref<8x128xf32, #tpu.memory_space<vmem>>, %arg2: memref<1x128xf32, #tpu.memory_space<vmem>>, %arg3: memref<1x128xf32, #tpu.memory_space<vmem>>, %arg4: memref<128x128xbf16, #tpu.memory_space<vmem>>, %arg5: memref<1x128xf32, #tpu.memory_space<vmem>>, %arg6: memref<128x128xbf16, #tpu.memory_space<vmem>>, %arg7: memref<1x128xf32, #tpu.memory_space<vmem>>, %arg8: memref<8x128xf32, #tpu.memory_space<vmem>>) attributes {dimension_semantics = [#tpu.dimension_semantics<parallel>], iteration_bounds = array<i64: 2>, scalar_prefetch = 0 : i64, scratch_operands = 0 : i64, tpu.core_type = #tpu.core_type<tc>, window_params = [{transform_indices = @transform_0, window_bounds = array<i64: 8, 128>}, {pipeline_mode = #tpu.pipeline_mode<synchronous>, transform_indices = @transform_1, window_bounds = array<i64: 1, 128>}, {pipeline_mode = #tpu.pipeline_mode<synchronous>, transform_indices = @transform_2, window_bounds = array<i64: 1, 128>}, {pipeline_mode = #tpu.pipeline_mode<synchronous>, transform_indices = @transform_3, window_bounds = array<i64: 128, 128>}, {pipeline_mode = #tpu.pipeline_mode<synchronous>, transform_indices = @transform_4, window_bounds = array<i64: 1, 128>}, {pipeline_mode = #tpu.pipeline_mode<synchronous>, transform_indices = @transform_5, window_bounds = array<i64: 128, 128>}, {pipeline_mode = #tpu.pipeline_mode<synchronous>, transform_indices = @transform_6, window_bounds = array<i64: 1, 128>}, {transform_indices = @transform_7, window_bounds = array<i64: 8, 128>}]} {
    %c0 = arith.constant 0 : index
    %c0_0 = arith.constant 0 : index
    %0 = vector.load %arg1[%c0, %c0_0] : memref<8x128xf32, #tpu.memory_space<vmem>>, vector<8x128xf32>
    %1 = tpu.iota {dimensions = array<i32: 1>} : vector<1x128xi32>
    %c32_i32 = arith.constant 32 : i32
    %2 = vector.broadcast %c32_i32 : i32 to vector<1x128xi32>
    %3 = arith.cmpi slt, %1, %2 : vector<1x128xi32>
    %4 = arith.extui %3 : vector<1x128xi1> to vector<1x128xi32>
    %5 = arith.sitofp %4 : vector<1x128xi32> to vector<1x128xf32>
    %6 = vector.broadcast %5 : vector<1x128xf32> to vector<8x128xf32>
    %7 = arith.mulf %0, %6 : vector<8x128xf32>
    %cst = arith.constant dense<0.000000e+00> : vector<8xf32>
    %8 = vector.multi_reduction <add>, %7, %cst [1] : vector<8x128xf32> to vector<8xf32>
    %9 = vector.shape_cast %8 : vector<8xf32> to vector<8x1xf32>
    %cst_1 = arith.constant 3.125000e-02 : f32
    %10 = vector.broadcast %cst_1 : f32 to vector<8x1xf32>
    %11 = arith.mulf %9, %10 : vector<8x1xf32>
    %12 = vector.broadcast %11 : vector<8x1xf32> to vector<8x128xf32>
    %13 = arith.subf %0, %12 : vector<8x128xf32>
    %14 = vector.broadcast %5 : vector<1x128xf32> to vector<8x128xf32>
    %15 = arith.mulf %13, %14 : vector<8x128xf32>
    %16 = arith.mulf %15, %15 : vector<8x128xf32>
    %cst_2 = arith.constant dense<0.000000e+00> : vector<8xf32>
    %17 = vector.multi_reduction <add>, %16, %cst_2 [1] : vector<8x128xf32> to vector<8xf32>
    %18 = vector.shape_cast %17 : vector<8xf32> to vector<8x1xf32>
    %cst_3 = arith.constant 3.125000e-02 : f32
    %19 = vector.broadcast %cst_3 : f32 to vector<8x1xf32>
    %20 = arith.mulf %18, %19 : vector<8x1xf32>
    %cst_4 = arith.constant 9.99999974E-6 : f32
    %21 = vector.broadcast %cst_4 : f32 to vector<8x1xf32>
    %22 = arith.addf %20, %21 : vector<8x1xf32>
    %23 = math.rsqrt %22 : vector<8x1xf32>
    %24 = vector.broadcast %23 : vector<8x1xf32> to vector<8x128xf32>
    %25 = arith.mulf %15, %24 : vector<8x128xf32>
    %c0_5 = arith.constant 0 : index
    %c0_6 = arith.constant 0 : index
    %26 = vector.load %arg2[%c0_5, %c0_6] : memref<1x128xf32, #tpu.memory_space<vmem>>, vector<1x128xf32>
    %27 = vector.broadcast %26 : vector<1x128xf32> to vector<8x128xf32>
    %28 = arith.mulf %25, %27 : vector<8x128xf32>
    %c0_7 = arith.constant 0 : index
    %c0_8 = arith.constant 0 : index
    %29 = vector.load %arg3[%c0_7, %c0_8] : memref<1x128xf32, #tpu.memory_space<vmem>>, vector<1x128xf32>
    %30 = vector.broadcast %29 : vector<1x128xf32> to vector<8x128xf32>
    %31 = arith.addf %28, %30 : vector<8x128xf32>
    %32 = arith.truncf %31 : vector<8x128xf32> to vector<8x128xbf16>
    %cst_9 = arith.constant 0.000000e+00 : f32
    %33 = vector.broadcast %cst_9 : f32 to vector<8x128xf32>
    %c0_10 = arith.constant 0 : index
    %c0_11 = arith.constant 0 : index
    %34 = vector.load %arg4[%c0_10, %c0_11] : memref<128x128xbf16, #tpu.memory_space<vmem>>, vector<128x128xbf16>
    %cst_12 = arith.constant dense<0.000000e+00> : vector<8x128xf32>
    %35 = tpu.matmul %32, %34, %cst_12 {dimension_numbers = #tpu.dot_dimension_numbers<[1], [0], [0], [1], [0, 0, 1, 1], [], []>} : vector<8x128xbf16>, vector<128x128xbf16>, vector<8x128xf32> -> vector<8x128xf32>
    %c0_13 = arith.constant 0 : index
    %c0_14 = arith.constant 0 : index
    %36 = vector.load %arg5[%c0_13, %c0_14] : memref<1x128xf32, #tpu.memory_space<vmem>>, vector<1x128xf32>
    %37 = vector.broadcast %36 : vector<1x128xf32> to vector<8x128xf32>
    %38 = arith.addf %35, %37 : vector<8x128xf32>
    %cst_15 = arith.constant 5.000000e-01 : f32
    %39 = vector.broadcast %cst_15 : f32 to vector<8x128xf32>
    %40 = arith.mulf %39, %38 : vector<8x128xf32>
    %cst_16 = arith.constant 0.707106769 : f32
    %41 = vector.broadcast %cst_16 : f32 to vector<8x128xf32>
    %42 = arith.mulf %38, %41 : vector<8x128xf32>
    %43 = math.erf %42 : vector<8x128xf32>
    %cst_17 = arith.constant 1.000000e+00 : f32
    %44 = vector.broadcast %cst_17 : f32 to vector<8x128xf32>
    %45 = arith.addf %44, %43 : vector<8x128xf32>
    %46 = arith.mulf %40, %45 : vector<8x128xf32>
    %47 = arith.truncf %46 : vector<8x128xf32> to vector<8x128xbf16>
    %c0_18 = arith.constant 0 : index
    %c0_19 = arith.constant 0 : index
    %48 = vector.load %arg6[%c0_18, %c0_19] : memref<128x128xbf16, #tpu.memory_space<vmem>>, vector<128x128xbf16>
    %cst_20 = arith.constant dense<0.000000e+00> : vector<8x128xf32>
    %49 = tpu.matmul %47, %48, %cst_20 {dimension_numbers = #tpu.dot_dimension_numbers<[1], [0], [0], [1], [0, 0, 1, 1], [], []>} : vector<8x128xbf16>, vector<128x128xbf16>, vector<8x128xf32> -> vector<8x128xf32>
    %50 = arith.addf %33, %49 : vector<8x128xf32>
    %c0_21 = arith.constant 0 : index
    %c0_22 = arith.constant 0 : index
    %51 = vector.load %arg7[%c0_21, %c0_22] : memref<1x128xf32, #tpu.memory_space<vmem>>, vector<1x128xf32>
    %52 = vector.broadcast %51 : vector<1x128xf32> to vector<8x128xf32>
    %53 = arith.addf %50, %52 : vector<8x128xf32>
    %c0_23 = arith.constant 0 : index
    %c0_24 = arith.constant 0 : index
    %54 = vector.load %arg8[%c0_23, %c0_24] : memref<8x128xf32, #tpu.memory_space<vmem>>, vector<8x128xf32>
    tpu.vector_store %arg8[%c0_23, %c0_24], %53 {strides = array<i32>} : memref<8x128xf32, #tpu.memory_space<vmem>>, vector<8x128xf32>,
    return
  }
  func.func @transform_0(%arg0: i32) -> (i32, i32) {
    %c0_i32 = arith.constant 0 : i32
    %c0_i32_0 = arith.constant 0 : i32
    return %arg0, %c0_i32 : i32, i32
  }
  func.func @transform_1(%arg0: i32) -> (i32, i32) {
    %c0_i32 = arith.constant 0 : i32
    %c0_i32_0 = arith.constant 0 : i32
    %c0_i32_1 = arith.constant 0 : i32
    return %c0_i32, %c0_i32_0 : i32, i32
  }
  func.func @transform_2(%arg0: i32) -> (i32, i32) {
    %c0_i32 = arith.constant 0 : i32
    %c0_i32_0 = arith.constant 0 : i32
    %c0_i32_1 = arith.constant 0 : i32
    return %c0_i32, %c0_i32_0 : i32, i32
  }
  func.func @transform_3(%arg0: i32) -> (i32, i32) {
    %c0_i32 = arith.constant 0 : i32
    %c0_i32_0 = arith.constant 0 : i32
    %c0_i32_1 = arith.constant 0 : i32
    return %c0_i32, %c0_i32_0 : i32, i32
  }
  func.func @transform_4(%arg0: i32) -> (i32, i32) {
    %c0_i32 = arith.constant 0 : i32
    %c0_i32_0 = arith.constant 0 : i32
    %c0_i32_1 = arith.constant 0 : i32
    return %c0_i32, %c0_i32_0 : i32, i32
  }
  func.func @transform_5(%arg0: i32) -> (i32, i32) {
    %c0_i32 = arith.constant 0 : i32
    %c0_i32_0 = arith.constant 0 : i32
    %c0_i32_1 = arith.constant 0 : i32
    return %c0_i32, %c0_i32_0 : i32, i32
  }
  func.func @transform_6(%arg0: i32) -> (i32, i32) {
    %c0_i32 = arith.constant 0 : i32
    %c0_i32_0 = arith.constant 0 : i32
    %c0_i32_1 = arith.constant 0 : i32
    return %c0_i32, %c0_i32_0 : i32, i32
  }
  func.func @transform_7(%arg0: i32) -> (i32, i32) {
    %c0_i32 = arith.constant 0 : i32
    %c0_i32_0 = arith.constant 0 : i32
    return %arg0, %c0_i32 : i32, i32
  }
}

</mosaic_0001>

<llo_original>
// kernel: tpu_custom_call.1
$region0: #{tpu_custom_call.1}
  #allocation0 [shape = 'u32[]', space=smem, size = 0x4, offset = 0x4, fixed_abs, tag = 'smem constant byte address 0x4 - core index']
  #allocation1 [shape = 'u32[144,128]{1,0:T(1,128)}', space=vmem, size = 0x12000, scoped, tag = 'internal scratch']
  %s0 = inlined_call_operand.hbm [shape: f32[16,128], index: 0, kind: input, shape index: {}]
  %s1 = inlined_call_operand.vmem [shape: f32[1,128], index: 1, kind: input, shape index: {}]
  %s2 = inlined_call_operand.vmem [shape: f32[1,128], index: 2, kind: input, shape index: {}]
  %s3 = inlined_call_operand.hbm [shape: bf16[128,128], index: 3, kind: input, shape index: {}]
  %s4 = inlined_call_operand.vmem [shape: f32[1,128], index: 4, kind: input, shape index: {}]
  %s5 = inlined_call_operand.hbm [shape: bf16[128,128], index: 5, kind: input, shape index: {}]
  %s6 = inlined_call_operand.vmem [shape: f32[1,128], index: 6, kind: input, shape index: {}]
  %s7 = inlined_call_operand.hbm [shape: f32[16,128], index: 7, kind: output, shape index: {}]
  %s8 = sld [smem:[#allocation0]]
  $region73: #{tpu_custom_call.1} parent=0
    _
  %s10 = ssub.s32 1, %s8
  %s11 = scalar_select 0, %s10, %s8
  $region1: #{tpu_custom_call.1} parent=0
    #allocation2 [shape = 'u8[8192]{0}', space=vmem, size = 0x2000, scoped, tag = 'input window, operand 0']
    #allocation3 [shape = 's32[2]{0}', space=sflag, size = 0x8, scoped, tag = 'scoped memory for tpu_custom_call.1']
    #allocation4 [shape = 's32[2]{0}', space=sflag, size = 0x8, scoped, tag = 'scoped memory for tpu_custom_call.1']
    #allocation5 [shape = 'u8[32768]{0}', space=vmem, size = 0x8000, scoped, tag = 'input window, operand 3, single buffered']
    #allocation6 [shape = 's32[1]{0}', space=sflag, size = 0x4, scoped, tag = 'scoped memory for tpu_custom_call.1']
    #allocation7 [shape = 'u8[32768]{0}', space=vmem, size = 0x8000, scoped, tag = 'input window, operand 5, single buffered']
    #allocation8 [shape = 'u8[8192]{0}', space=vmem, size = 0x2000, scoped, tag = 'output window, operand 0']
    %12 = vsyncpa [#allocation3], 0
    %s13 = scalar_lea.sflag [#allocation3], 1
    %14 = vsyncpa %s13, 0
    %15 = vsyncpa [#allocation6], 0
    %16 = vsyncpa [#allocation4], 0
    %s17 = scalar_lea.sflag [#allocation4], 1
    %18 = vsyncpa %s17, 0
    loop: start=0, step=1, limit=4
    $region2: #{tpu_custom_call.1} parent=1 // loop_pre_header
      _
    $region3: #{tpu_custom_call.1} parent=1 // loop_header
      %s20 = sphi 0, %s24
      %p21 = scmp.ge.s32.totalorder %s20, 4
      %s30 = sphi 0, %s32
      %s33 = sphi 0, %s30
      %s34 = sphi 0, %s33
      %s50 = sphi 0, %s34
      %s54 = sphi 0, %s54
      %s56 = sphi 0, %s54
      %s57 = sphi 0, %s56
      %s71 = sphi 0, %s57
      %s75 = sphi 0, %s75
      %s77 = sphi 0, %s75
      %s78 = sphi 0, %s77
      %s92 = sphi 0, %s78
      %s96 = sphi 0, %s96
      %s98 = sphi 0, %s96
      %s99 = sphi 0, %s98
      %s113 = sphi 0, %s99
      %s117 = sphi 0, %s117
      %s119 = sphi 0, %s117
      %s120 = sphi 0, %s119
      %s134 = sphi 0, %s120
      %s138 = sphi 0, %s138
      %s140 = sphi 0, %s138
      %s141 = sphi 0, %s140
      %s155 = sphi 0, %s141
      %s159 = sphi 0, %s159
      %s161 = sphi 0, %s159
      %s162 = sphi 0, %s161
      %s176 = sphi 0, %s162
      %s182 = sphi 0, %s184
      %s185 = sphi 0, %s182
      %s186 = sphi 0, %s185
      %s202 = sphi 0, %s186
    $region4: #{tpu_custom_call.1} parent=1 // loop_header_branch
      %23 = sbr.rel (%p21) target = $region8
    $region5: #{tpu_custom_call.1} parent=1 // loop_body
      %s25 = ssub.s32 %s20, 1
      %s26 = ssub.s32 %s20, 2
      %s27 = sadd.s32 %s20, 1
      %s28 = ssub.s32 %s20, %s27
      %p29 = scmp.eq.s32.totalorder %s28, 0
      %s31 = sadd.s32 %s30, 1
      %s32 = scalar_select %p29, %s30, %s31
      %p35 = pneg %p29
      %p36 = scmp.eq.s32.totalorder %s20, 1
      %p37 = por %p35, %p36
      %p38 = scmp.ne.s32.totalorder %s30, %s33
      %p39 = scmp.eq.s32.totalorder %s20, 0
      %p40 = por %p38, %p39
      %p41 = scmp.ne.s32.totalorder %s30, %s33
      %p42 = scmp.eq.s32.totalorder %s25, 1
      %p43 = por %p41, %p42
      %p44 = scmp.ne.s32.totalorder %s33, %s34
      %p45 = scmp.eq.s32.totalorder %s25, 0
      %p46 = por %p44, %p45
      %p47 = scmp.ne.s32.totalorder %s33, %s34
      %p48 = scmp.eq.s32.totalorder %s26, 1
      %p49 = por %p47, %p48
      %p51 = scmp.ne.s32.totalorder %s34, %s50
      %p52 = scmp.eq.s32.totalorder %s26, 0
      %p53 = por %p51, %p52
      %s55 = sadd.s32 %s54, 1
      %p58 = scmp.eq.s32.totalorder %s20, 1
      %p59 = scmp.ne.s32.totalorder %s54, %s56
      %p60 = scmp.eq.s32.totalorder %s20, 0
      %p61 = por %p59, %p60
      %p62 = scmp.ne.s32.totalorder %s54, %s56
      %p63 = scmp.eq.s32.totalorder %s25, 1
      %p64 = por %p62, %p63
      %p65 = scmp.ne.s32.totalorder %s56, %s57
      %p66 = scmp.eq.s32.totalorder %s25, 0
      %p67 = por %p65, %p66
      %p68 = scmp.ne.s32.totalorder %s56, %s57
      %p69 = scmp.eq.s32.totalorder %s26, 1
      %p70 = por %p68, %p69
      %p72 = scmp.ne.s32.totalorder %s57, %s71
      %p73 = scmp.eq.s32.totalorder %s26, 0
      %p74 = por %p72, %p73
      %s76 = sadd.s32 %s75, 1
      %p79 = scmp.eq.s32.totalorder %s20, 1
      %p80 = scmp.ne.s32.totalorder %s75, %s77
      %p81 = scmp.eq.s32.totalorder %s20, 0
      %p82 = por %p80, %p81
      %p83 = scmp.ne.s32.totalorder %s75, %s77
      %p84 = scmp.eq.s32.totalorder %s25, 1
      %p85 = por %p83, %p84
      %p86 = scmp.ne.s32.totalorder %s77, %s78
      %p87 = scmp.eq.s32.totalorder %s25, 0
      %p88 = por %p86, %p87
      %p89 = scmp.ne.s32.totalorder %s77, %s78
      %p90 = scmp.eq.s32.totalorder %s26, 1
      %p91 = por %p89, %p90
      %p93 = scmp.ne.s32.totalorder %s78, %s92
      %p94 = scmp.eq.s32.totalorder %s26, 0
      %p95 = por %p93, %p94
      %s97 = sadd.s32 %s96, 1
      %p100 = scmp.eq.s32.totalorder %s20, 1
      %p101 = scmp.ne.s32.totalorder %s96, %s98
      %p102 = scmp.eq.s32.totalorder %s20, 0
      %p103 = por %p101, %p102
      %p104 = scmp.ne.s32.totalorder %s96, %s98
      %p105 = scmp.eq.s32.totalorder %s25, 1
      %p106 = por %p104, %p105
      %p107 = scmp.ne.s32.totalorder %s98, %s99
      %p108 = scmp.eq.s32.totalorder %s25, 0
      %p109 = por %p107, %p108
      %p110 = scmp.ne.s32.totalorder %s98, %s99
      %p111 = scmp.eq.s32.totalorder %s26, 1
      %p112 = por %p110, %p111
      %p114 = scmp.ne.s32.totalorder %s99, %s113
      %p115 = scmp.eq.s32.totalorder %s26, 0
      %p116 = por %p114, %p115
      %s118 = sadd.s32 %s117, 1
      %p121 = scmp.eq.s32.totalorder %s20, 1
      %p122 = scmp.ne.s32.totalorder %s117, %s119
      %p123 = scmp.eq.s32.totalorder %s20, 0
      %p124 = por %p122, %p123
      %p125 = scmp.ne.s32.totalorder %s117, %s119
      %p126 = scmp.eq.s32.totalorder %s25, 1
      %p127 = por %p125, %p126
      %p128 = scmp.ne.s32.totalorder %s119, %s120
      %p129 = scmp.eq.s32.totalorder %s25, 0
      %p130 = por %p128, %p129
      %p131 = scmp.ne.s32.totalorder %s119, %s120
      %p132 = scmp.eq.s32.totalorder %s26, 1
      %p133 = por %p131, %p132
      %p135 = scmp.ne.s32.totalorder %s120, %s134
      %p136 = scmp.eq.s32.totalorder %s26, 0
      %p137 = por %p135, %p136
      %s139 = sadd.s32 %s138, 1
      %p142 = scmp.eq.s32.totalorder %s20, 1
      %p143 = scmp.ne.s32.totalorder %s138, %s140
      %p144 = scmp.eq.s32.totalorder %s20, 0
      %p145 = por %p143, %p144
      %p146 = scmp.ne.s32.totalorder %s138, %s140
      %p147 = scmp.eq.s32.totalorder %s25, 1
      %p148 = por %p146, %p147
      %p149 = scmp.ne.s32.totalorder %s140, %s141
      %p150 = scmp.eq.s32.totalorder %s25, 0
      %p151 = por %p149, %p150
      %p152 = scmp.ne.s32.totalorder %s140, %s141
      %p153 = scmp.eq.s32.totalorder %s26, 1
      %p154 = por %p152, %p153
      %p156 = scmp.ne.s32.totalorder %s141, %s155
      %p157 = scmp.eq.s32.totalorder %s26, 0
      %p158 = por %p156, %p157
      %s160 = sadd.s32 %s159, 1
      %p163 = scmp.eq.s32.totalorder %s20, 1
      %p164 = scmp.ne.s32.totalorder %s159, %s161
      %p165 = scmp.eq.s32.totalorder %s20, 0
      %p166 = por %p164, %p165
      %p167 = scmp.ne.s32.totalorder %s159, %s161
      %p168 = scmp.eq.s32.totalorder %s25, 1
      %p169 = por %p167, %p168
      %p170 = scmp.ne.s32.totalorder %s161, %s162
      %p171 = scmp.eq.s32.totalorder %s25, 0
      %p172 = por %p170, %p171
      %p173 = scmp.ne.s32.totalorder %s161, %s162
      %p174 = scmp.eq.s32.totalorder %s26, 1
      %p175 = por %p173, %p174
      %p177 = scmp.ne.s32.totalorder %s162, %s176
      %p178 = scmp.eq.s32.totalorder %s26, 0
      %p179 = por %p177, %p178
      %s180 = ssub.s32 %s20, %s27
      %p181 = scmp.eq.s32.totalorder %s180, 0
      %s183 = sadd.s32 %s182, 1
      %s184 = scalar_select %p181, %s182, %s183
      %p187 = pneg %p181
      %p188 = scmp.eq.s32.totalorder %s20, 1
      %p189 = por %p187, %p188
      %p190 = scmp.ne.s32.totalorder %s182, %s185
      %p191 = scmp.eq.s32.totalorder %s20, 0
      %p192 = por %p190, %p191
      %p193 = scmp.ne.s32.totalorder %s182, %s185
      %p194 = scmp.eq.s32.totalorder %s25, 1
      %p195 = por %p193, %p194
      %p196 = scmp.ne.s32.totalorder %s185, %s186
      %p197 = scmp.eq.s32.totalorder %s25, 0
      %p198 = por %p196, %p197
      %p199 = scmp.ne.s32.totalorder %s185, %s186
      %p200 = scmp.eq.s32.totalorder %s26, 1
      %p201 = por %p199, %p200
      %p203 = scmp.ne.s32.totalorder %s186, %s202
      %p204 = scmp.eq.s32.totalorder %s26, 0
      %p205 = por %p203, %p204
      %p206 = scmp.le.s32.totalorder 1, %s20
      %p207 = scmp.lt.s32.totalorder %s20, 3
      %p208 = pnand %p206, %p207
      %p209 = pneg %p208
      // Predicated region
      $region9: #{tpu_custom_call.1} parent=5 // pred_check
        _
      $region10: #{tpu_custom_call.1} parent=5 // pred_check_branch
        %211 = sbr.rel (%p208) target = $region12
      $region11: #{tpu_custom_call.1} parent=5 // pred_region
        %s212 = ssub.s32 %s20, 1
        // Predicated region
        $region13: #{tpu_custom_call.1} parent=11 // pred_check
          %p213 = pneg %p67
        $region14: #{tpu_custom_call.1} parent=11 // pred_check_branch
          %215 = sbr.rel (%p213) target = $region16
        $region15: #{tpu_custom_call.1} parent=11 // pred_region
          _
        $region16: #{tpu_custom_call.1} parent=11 // pred_fallthru
          _
        // Predicated region
        $region17: #{tpu_custom_call.1} parent=11 // pred_check
          %p216 = pneg %p88
        $region18: #{tpu_custom_call.1} parent=11 // pred_check_branch
          %218 = sbr.rel (%p216) target = $region20
        $region19: #{tpu_custom_call.1} parent=11 // pred_region
          _
        $region20: #{tpu_custom_call.1} parent=11 // pred_fallthru
          _
        // Predicated region
        $region21: #{tpu_custom_call.1} parent=11 // pred_check
          %p219 = pneg %p109
        $region22: #{tpu_custom_call.1} parent=11 // pred_check_branch
          %221 = sbr.rel (%p219) target = $region24
        $region23: #{tpu_custom_call.1} parent=11 // pred_region
          %s223 = ssub.s32 1024, 1024
          %224 = vsyncadd [#allocation6], %s223
          %s225 = sshll.u32 [#allocation5], 4
          %s226 = int_to_ptr.vmem [resolvable:$true] %s225
          %231 = dma.hbm_to_vmem [thread:$0]  %s3, 1024, %s226, [#allocation6], 64, 64, 4
        $region24: #{tpu_custom_call.1} parent=11 // pred_fallthru
          _
        // Predicated region
        $region25: #{tpu_custom_call.1} parent=11 // pred_check
          %p232 = pneg %p130
        $region26: #{tpu_custom_call.1} parent=11 // pred_check_branch
          %234 = sbr.rel (%p232) target = $region28
        $region27: #{tpu_custom_call.1} parent=11 // pred_region
          _
        $region28: #{tpu_custom_call.1} parent=11 // pred_fallthru
          _
        // Predicated region
        $region29: #{tpu_custom_call.1} parent=11 // pred_check
          %p235 = pneg %p151
        $region30: #{tpu_custom_call.1} parent=11 // pred_check_branch
          %237 = sbr.rel (%p235) target = $region32
        $region31: #{tpu_custom_call.1} parent=11 // pred_region
          %s239 = ssub.s32 1024, 1024
          %240 = vsyncadd [#allocation6], %s239
          %s241 = sshll.u32 [#allocation7], 4
          %s242 = int_to_ptr.vmem [resolvable:$true] %s241
          %247 = dma.hbm_to_vmem [thread:$0]  %s5, 1024, %s242, [#allocation6], 64, 64, 4
        $region32: #{tpu_custom_call.1} parent=11 // pred_fallthru
          _
        // Predicated region
        $region33: #{tpu_custom_call.1} parent=11 // pred_check
          %p248 = pneg %p172
        $region34: #{tpu_custom_call.1} parent=11 // pred_check_branch
          %250 = sbr.rel (%p248) target = $region36
        $region35: #{tpu_custom_call.1} parent=11 // pred_region
          _
        $region36: #{tpu_custom_call.1} parent=11 // pred_fallthru
          _
      $region12: #{tpu_custom_call.1} parent=5 // pred_fallthru
        _
      %p251 = scmp.lt.s32.totalorder %s20, 2
      // Predicated region
      $region37: #{tpu_custom_call.1} parent=5 // pred_check
        %p252 = pneg %p251
      $region38: #{tpu_custom_call.1} parent=5 // pred_check_branch
        %254 = sbr.rel (%p252) target = $region40
      $region39: #{tpu_custom_call.1} parent=5 // pred_region
        // Predicated region
        $region41: #{tpu_custom_call.1} parent=39 // pred_check
          %p255 = pneg %p40
        $region42: #{tpu_custom_call.1} parent=39 // pred_check_branch
          %257 = sbr.rel (%p255) target = $region44
        $region43: #{tpu_custom_call.1} parent=39 // pred_region
          %s258 = sand.u32 %s30, 1
          %s259 = scalar_lea.sflag [#allocation3], %s258
          %s260 = sand.u32 %s30, 1
          %s261 = smul.addr %s260, 8
          %s262 = scalar_lea.vmem [#allocation2], %s261
          %s264 = ssub.s32 128, 128
          %265 = vsyncadd %s259, %s264
          %s266 = smul.addr %s20, 128
          %s267 = scalar_lea.hbm %s0, %s266
          %s269 = sshll.u32 %s262, 4
          %s270 = int_to_ptr.vmem [resolvable:$true] %s269
          %272 = dma.hbm_to_vmem [thread:$0]  %s267, 128, %s270, %s259
        $region44: #{tpu_custom_call.1} parent=39 // pred_fallthru
          _
      $region40: #{tpu_custom_call.1} parent=5 // pred_fallthru
        _
      %p273 = scmp.le.s32.totalorder 1, %s20
      %p274 = scmp.lt.s32.totalorder %s20, 3
      %p275 = pnand %p273, %p274
      %p276 = pneg %p275
      // Predicated region
      $region45: #{tpu_custom_call.1} parent=5 // pred_check
        _
      $region46: #{tpu_custom_call.1} parent=5 // pred_check_branch
        %278 = sbr.rel (%p275) target = $region48
      $region47: #{tpu_custom_call.1} parent=5 // pred_region
        %s279 = ssub.s32 %s20, 1
        %s280 = sand.u32 %s33, 1
        %s281 = scalar_lea.sflag [#allocation3], %s280
        %s282 = sand.u32 %s33, 1
        %s283 = smul.addr %s282, 8
        %s284 = scalar_lea.vmem [#allocation2], %s283
        // Predicated region
        $region49: #{tpu_custom_call.1} parent=47 // pred_check
          %p285 = pneg %p46
        $region50: #{tpu_custom_call.1} parent=47 // pred_check_branch
          %287 = sbr.rel (%p285) target = $region52
        $region51: #{tpu_custom_call.1} parent=47 // pred_region
          %288 = dma.done %s281, 128
        $region52: #{tpu_custom_call.1} parent=47 // pred_fallthru
          _
        // Predicated region
        $region53: #{tpu_custom_call.1} parent=47 // pred_check
          %p289 = pneg %p109
        $region54: #{tpu_custom_call.1} parent=47 // pred_check_branch
          %291 = sbr.rel (%p289) target = $region56
        $region55: #{tpu_custom_call.1} parent=47 // pred_region
          %292 = dma.done [#allocation6], 1024
        $region56: #{tpu_custom_call.1} parent=47 // pred_fallthru
          _
        // Predicated region
        $region57: #{tpu_custom_call.1} parent=47 // pred_check
          %p293 = pneg %p151
        $region58: #{tpu_custom_call.1} parent=47 // pred_check_branch
          %295 = sbr.rel (%p293) target = $region60
        $region59: #{tpu_custom_call.1} parent=47 // pred_region
          %296 = dma.done [#allocation6], 1024
        $region60: #{tpu_custom_call.1} parent=47 // pred_fallthru
          _
        %s297 = sand.u32 %s33, 1
        %s298 = scalar_lea.sflag [#allocation3], %s297
        %s299 = sand.u32 %s33, 1
        %s300 = smul.addr %s299, 8
        %s301 = scalar_lea.vmem [#allocation2], %s300
        %p302 = pneg %p46
        %p303 = pneg %p43
        %p304 = pneg %p67
        %p305 = pneg %p64
        %p306 = pneg %p88
        %p307 = pneg %p85
        %p308 = pneg %p109
        %p309 = pneg %p106
        %p310 = pneg %p130
        %p311 = pneg %p127
        %p312 = pneg %p151
        %p313 = pneg %p148
        %p314 = pneg %p172
        %p315 = pneg %p169
        %p316 = pneg %p198
        %p317 = pneg %p195
        %s318 = sand.u32 %s185, 1
        %s319 = scalar_lea.sflag [#allocation4], %s318
        %s320 = sand.u32 %s185, 1
        %s321 = smul.addr %s320, 8
        %s322 = scalar_lea.vmem [#allocation8], %s321
        %v324 = vld [vmem:[%s284] sm:$0xff]
        %v325 = vlaneseq
        %v326 = vand.u32 %v325, 127
        %vm327 = vcmp.lt.s32.totalorder %v326, 32
        %v328 = vsel %vm327, 1, 0
        %v329 = vcvt.s32.f32 %v328
        %v330 = vmul.f32 %v324, %v329
        %331 = vadd.xlane.f32.xlu0 %v330
        %v332 = vpop.xlane.xlu0 %331
        %v333 = vmul.f32 %v332, 0.03125
        %v334 = vsub.f32 %v324, %v333
        %v335 = vmul.f32 %v334, %v329
        %v336 = vmul.f32 %v335, %v335
        %337 = vadd.xlane.f32.xlu0 %v336
        %v338 = vpop.xlane.xlu0 %337
        %v339 = vmul.f32 %v338, 0.03125
        %v340 = vadd.f32 %v339, 1e-05
        %v341 = vrsqrt.pop %v340
        %v342 = vmul.f32 %v335, %v341
        %v343 = vld [vmem:[%s1] sm:$0x1]
        %v345 = vlaneseq
        %v346 = vshrl.u32 %v345, 7
        %v347 = vsub.s32 0, %v346
        %v348 = vrot.slane %v343, %v347
        %v350 = vmul.f32 %v342, %v348
        %v351 = vld [vmem:[%s2] sm:$0x1]
        %v353 = vlaneseq
        %v354 = vshrl.u32 %v353, 7
        %v355 = vsub.s32 0, %v354
        %v356 = vrot.slane %v351, %v355
        %v358 = vadd.f32 %v350, %v356
        %v359 = vpack.c.bf16 %v358, %v358
        %v360 = vld [vmem:[#allocation5] sm:$0xf]
        %v361 = vld [vmem:[#allocation5 + $0x4] sm:$0xf]
        %v362 = vld [vmem:[#allocation5 + $0x8] sm:$0xf]
        %v363 = vld [vmem:[#allocation5 + $0xc] sm:$0xf]
        %v364 = vld [vmem:[#allocation5 + $0x10] sm:$0xf]
        %v365 = vld [vmem:[#allocation5 + $0x14] sm:$0xf]
        %v366 = vld [vmem:[#allocation5 + $0x18] sm:$0xf]
        %v367 = vld [vmem:[#allocation5 + $0x1c] sm:$0xf]
        %v368 = vld [vmem:[#allocation5 + $0x20] sm:$0xf]
        %v369 = vld [vmem:[#allocation5 + $0x24] sm:$0xf]
        %v370 = vld [vmem:[#allocation5 + $0x28] sm:$0xf]
        %v371 = vld [vmem:[#allocation5 + $0x2c] sm:$0xf]
        %v372 = vld [vmem:[#allocation5 + $0x30] sm:$0xf]
        %v373 = vld [vmem:[#allocation5 + $0x34] sm:$0xf]
        %v374 = vld [vmem:[#allocation5 + $0x38] sm:$0xf]
        %v375 = vld [vmem:[#allocation5 + $0x3c] sm:$0xf]
        %v376 = vld [vmem:[%s4] sm:$0x1]
        %v378 = vlaneseq
        %v379 = vshrl.u32 %v378, 7
        %v380 = vsub.s32 0, %v379
        %v381 = vrot.slane %v376, %v380
        %v399 = vunpack.c.l.b16 %v360
        %v400 = vunpack.c.l.b16 %v361
        %v401 = vunpack.c.l.b16 %v362
        %v402 = vunpack.c.l.b16 %v363
        %v403 = vunpack.c.l.b16 %v364
        %v404 = vunpack.c.l.b16 %v365
        %v405 = vunpack.c.l.b16 %v366
        %v406 = vunpack.c.l.b16 %v367
        %v407 = vunpack.c.l.b16 %v368
        %v408 = vunpack.c.l.b16 %v369
        %v409 = vunpack.c.l.b16 %v370
        %v410 = vunpack.c.l.b16 %v371
        %v411 = vunpack.c.l.b16 %v372
        %v412 = vunpack.c.l.b16 %v373
        %v413 = vunpack.c.l.b16 %v374
        %v414 = vunpack.c.l.b16 %v375
        %v415 = vpack.c.b16 %v400, %v399
        %v416 = vpack.c.b16 %v402, %v401
        %v417 = vpack.c.b16 %v404, %v403
        %v418 = vpack.c.b16 %v406, %v405
        %v419 = vpack.c.b16 %v408, %v407
        %v420 = vpack.c.b16 %v410, %v409
        %v421 = vpack.c.b16 %v412, %v411
        %v422 = vpack.c.b16 %v414, %v413
        %431 = vmatprep.subr.bf16.mxu0 0
        %432 = vmatpush1.bf16.msra.mxu0 %v415
        %433 = vmatprep.subr.bf16.mxu0 0
        %434 = vmatpush1.bf16.msra.mxu0 %v416
        %435 = vmatprep.subr.bf16.mxu0 0
        %436 = vmatpush1.bf16.msra.mxu0 %v417
        %437 = vmatprep.subr.bf16.mxu0 0
        %438 = vmatpush1.bf16.msra.mxu0 %v418
        %439 = vmatprep.subr.bf16.mxu0 0
        %440 = vmatpush1.bf16.msra.mxu0 %v419
        %441 = vmatprep.subr.bf16.mxu0 0
        %442 = vmatpush1.bf16.msra.mxu0 %v420
        %443 = vmatprep.subr.bf16.mxu0 0
        %444 = vmatpush1.bf16.msra.mxu0 %v421
        %445 = vmatprep.subr.bf16.mxu0 0
        %446 = vmatpush1.bf16.msra.mxu0 %v422
        %447 = vmatprep.subr.bf16.mxu0 0
        %448 = vmatpush1.bf16.msra.mxu0 0
        %449 = vmatprep.subr.bf16.mxu0 0
        %450 = vmatpush1.bf16.msra.mxu0 0
        %451 = vmatprep.subr.bf16.mxu0 0
        %452 = vmatpush1.bf16.msra.mxu0 0
        %453 = vmatprep.subr.bf16.mxu0 0
        %454 = vmatpush1.bf16.msra.mxu0 0
        %455 = vmatprep.subr.bf16.mxu0 0
        %456 = vmatpush1.bf16.msra.mxu0 0
        %457 = vmatprep.subr.bf16.mxu0 0
        %458 = vmatpush1.bf16.msra.mxu0 0
        %459 = vmatprep.subr.bf16.mxu0 0
        %460 = vmatpush1.bf16.msra.mxu0 0
        %461 = vmatprep.subr.bf16.mxu0 0
        %462 = vmatpush1.bf16.msra.mxu0 0
        %463 = vmatprep.mubr.bf16.mxu0 0
        %464 = vmatmul.mubr.bf16.gmra.mrb[0].mxu0 %v359
        %v465 = vpop.f32.mrb[0].mxu0
        %v466 = vadd.f32 %v381, %v465
        %v467 = vpop.f32.mrb[0].mxu0
        %v468 = vpop.f32.mrb[0].mxu0
        %v469 = vpop.f32.mrb[0].mxu0
        %470 = vdwg.mxu0
        %v471 = vmul.f32 %v466, 0.5
        %v472 = vmul.f32 %v466, 0.70710677
        %v473 = verf.f32.pop %v472
        %v474 = vadd.f32 %v473, 1.0
        %v475 = vmul.f32 %v471, %v474
        %v476 = vpack.c.bf16 %v475, %v475
        %v477 = vld [vmem:[#allocation7] sm:$0xf]
        %v478 = vld [vmem:[#allocation7 + $0x4] sm:$0xf]
        %v479 = vld [vmem:[#allocation7 + $0x8] sm:$0xf]
        %v480 = vld [vmem:[#allocation7 + $0xc] sm:$0xf]
        %v481 = vld [vmem:[#allocation7 + $0x10] sm:$0xf]
        %v482 = vld [vmem:[#allocation7 + $0x14] sm:$0xf]
        %v483 = vld [vmem:[#allocation7 + $0x18] sm:$0xf]
        %v484 = vld [vmem:[#allocation7 + $0x1c] sm:$0xf]
        %v485 = vld [vmem:[#allocation7 + $0x20] sm:$0xf]
        %v486 = vld [vmem:[#allocation7 + $0x24] sm:$0xf]
        %v487 = vld [vmem:[#allocation7 + $0x28] sm:$0xf]
        %v488 = vld [vmem:[#allocation7 + $0x2c] sm:$0xf]
        %v489 = vld [vmem:[#allocation7 + $0x30] sm:$0xf]
        %v490 = vld [vmem:[#allocation7 + $0x34] sm:$0xf]
        %v491 = vld [vmem:[#allocation7 + $0x38] sm:$0xf]
        %v492 = vld [vmem:[#allocation7 + $0x3c] sm:$0xf]
        %v493 = vld [vmem:[%s6] sm:$0x1]
        %v495 = vlaneseq
        %v496 = vshrl.u32 %v495, 7
        %v497 = vsub.s32 0, %v496
        %v498 = vrot.slane %v493, %v497
        %v516 = vunpack.c.l.b16 %v477
        %v517 = vunpack.c.l.b16 %v478
        %v518 = vunpack.c.l.b16 %v479
        %v519 = vunpack.c.l.b16 %v480
        %v520 = vunpack.c.l.b16 %v481
        %v521 = vunpack.c.l.b16 %v482
        %v522 = vunpack.c.l.b16 %v483
        %v523 = vunpack.c.l.b16 %v484
        %v524 = vunpack.c.l.b16 %v485
        %v525 = vunpack.c.l.b16 %v486
        %v526 = vunpack.c.l.b16 %v487
        %v527 = vunpack.c.l.b16 %v488
        %v528 = vunpack.c.l.b16 %v489
        %v529 = vunpack.c.l.b16 %v490
        %v530 = vunpack.c.l.b16 %v491
        %v531 = vunpack.c.l.b16 %v492
        %v532 = vpack.c.b16 %v517, %v516
        %v533 = vpack.c.b16 %v519, %v518
        %v534 = vpack.c.b16 %v521, %v520
        %v535 = vpack.c.b16 %v523, %v522
        %v536 = vpack.c.b16 %v525, %v524
        %v537 = vpack.c.b16 %v527, %v526
        %v538 = vpack.c.b16 %v529, %v528
        %v539 = vpack.c.b16 %v531, %v530
        %548 = vmatprep.subr.bf16.mxu0 0
        %549 = vmatpush1.bf16.msra.mxu0 %v532
        %550 = vmatprep.subr.bf16.mxu0 0
        %551 = vmatpush1.bf16.msra.mxu0 %v533
        %552 = vmatprep.subr.bf16.mxu0 0
        %553 = vmatpush1.bf16.msra.mxu0 %v534
        %554 = vmatprep.subr.bf16.mxu0 0
        %555 = vmatpush1.bf16.msra.mxu0 %v535
        %556 = vmatprep.subr.bf16.mxu0 0
        %557 = vmatpush1.bf16.msra.mxu0 %v536
        %558 = vmatprep.subr.bf16.mxu0 0
        %559 = vmatpush1.bf16.msra.mxu0 %v537
        %560 = vmatprep.subr.bf16.mxu0 0
        %561 = vmatpush1.bf16.msra.mxu0 %v538
        %562 = vmatprep.subr.bf16.mxu0 0
        %563 = vmatpush1.bf16.msra.mxu0 %v539
        %564 = vmatprep.subr.bf16.mxu0 0
        %565 = vmatpush1.bf16.msra.mxu0 0
        %566 = vmatprep.subr.bf16.mxu0 0
        %567 = vmatpush1.bf16.msra.mxu0 0
        %568 = vmatprep.subr.bf16.mxu0 0
        %569 = vmatpush1.bf16.msra.mxu0 0
        %570 = vmatprep.subr.bf16.mxu0 0
        %571 = vmatpush1.bf16.msra.mxu0 0
        %572 = vmatprep.subr.bf16.mxu0 0
        %573 = vmatpush1.bf16.msra.mxu0 0
        %574 = vmatprep.subr.bf16.mxu0 0
        %575 = vmatpush1.bf16.msra.mxu0 0
        %576 = vmatprep.subr.bf16.mxu0 0
        %577 = vmatpush1.bf16.msra.mxu0 0
        %578 = vmatprep.subr.bf16.mxu0 0
        %579 = vmatpush1.bf16.msra.mxu0 0
        %580 = vmatprep.mubr.bf16.mxu0 0
        %581 = vmatmul.mubr.bf16.gmra.mrb[0].mxu0 %v476
        %v582 = vpop.f32.mrb[0].mxu0
        %v583 = vadd.f32 %v498, %v582
        %v584 = vpop.f32.mrb[0].mxu0
        %v585 = vpop.f32.mrb[0].mxu0
        %v586 = vpop.f32.mrb[0].mxu0
        %587 = vdwg.mxu0
        %588 = vst [vmem:[%s322] sm:$0xff] %v583
        %s589 = sand.u32 %s185, 1
        %s590 = scalar_lea.sflag [#allocation4], %s589
        %s591 = sand.u32 %s185, 1
        %s592 = smul.addr %s591, 8
        %s593 = scalar_lea.vmem [#allocation8], %s592
        // Predicated region
        $region61: #{tpu_custom_call.1} parent=47 // pred_check
          %p594 = pneg %p195
        $region62: #{tpu_custom_call.1} parent=47 // pred_check_branch
          %596 = sbr.rel (%p594) target = $region64
        $region63: #{tpu_custom_call.1} parent=47 // pred_region
          %s598 = ssub.s32 128, 128
          %599 = vsyncadd %s590, %s598
          %s600 = smul.addr %s25, 128
          %s601 = scalar_lea.hbm %s7, %s600
          %s603 = sshll.u32 %s593, 4
          %s604 = int_to_ptr.vmem [resolvable:$true] %s603
          %606 = dma.vmem_to_hbm [thread:$0]  %s604, 128, %s601, %s590
        $region64: #{tpu_custom_call.1} parent=47 // pred_fallthru
          _
      $region48: #{tpu_custom_call.1} parent=5 // pred_fallthru
        _
      %p607 = scmp.le.s32.totalorder 2, %s20
      // Predicated region
      $region65: #{tpu_custom_call.1} parent=5 // pred_check
        %p608 = pneg %p607
      $region66: #{tpu_custom_call.1} parent=5 // pred_check_branch
        %610 = sbr.rel (%p608) target = $region68
      $region67: #{tpu_custom_call.1} parent=5 // pred_region
        %s611 = ssub.s32 %s20, 2
        // Predicated region
        $region69: #{tpu_custom_call.1} parent=67 // pred_check
          %p612 = pneg %p201
        $region70: #{tpu_custom_call.1} parent=67 // pred_check_branch
          %614 = sbr.rel (%p612) target = $region72
        $region71: #{tpu_custom_call.1} parent=67 // pred_region
          %s615 = sand.u32 %s186, 1
          %s616 = scalar_lea.sflag [#allocation4], %s615
          %s617 = sand.u32 %s186, 1
          %s618 = smul.addr %s617, 8
          %s619 = scalar_lea.vmem [#allocation8], %s618
          %620 = dma.done %s616, 128
        $region72: #{tpu_custom_call.1} parent=67 // pred_fallthru
          _
      $region68: #{tpu_custom_call.1} parent=5 // pred_fallthru
        _
    $region6: #{tpu_custom_call.1} parent=1 // loop_footer
      %s24 = sadd.s32 1, %s20
    $region7: #{tpu_custom_call.1} parent=1 // loop_footer_branch
      %19 = sbr.rel target = $region3
    $region8: #{tpu_custom_call.1} parent=1 // loop_exit
      _
    %621 = vsyncpa [#allocation3], 1
    %s622 = scalar_lea.sflag [#allocation3], 1
    %623 = vsyncpa %s622, 1
    %624 = vsyncpa [#allocation6], 1
    %625 = vsyncpa [#allocation4], 1
    %s626 = scalar_lea.sflag [#allocation4], 1
    %627 = vsyncpa %s626, 1

</llo_original>
